<compile_context>
chip_gen: v6e
topology: v6e:2x2x1
jax: 0.10.0
libtpu: 0.0.40
codegen_flags: <defaults>
</compile_context>

<pallas_src>
import math

import jax
import jax.numpy as jnp
from jax.experimental import pallas as pl
from jax.experimental.pallas import tpu as pltpu

_HALF_LOG_2PI = 0.5 * math.log(2.0 * math.pi)
_STD = 1.0          # s.std = 1 in the module (folded into the kernels below)
_LANES = 128
_SUBLANES = 8
_MAX_TILE_R = 1024  # 1024*128*4B = 0.5 MiB per stream-block
_MIN_GRID_STEPS = 4  # >=2 grid steps per TensorCore on v7x megacore

# Packed-parameter layout (41 f32 scalars in SMEM):
#   w1_fold[j, i] -> 3*j + i   (j in 0..7, i in 0..2; column 1 already negated)
#   b1[j]         -> 24 + j
#   w2[j]         -> 32 + j
#   b2            -> 40


def _round_up(a, b):
    return ((a + b - 1) // b) * b


def _compute_mu(p_ref, th, om):
    """mu = tanh(W2 @ relu(W1 @ [sin th, -cos th, om] + b1) + b2), lane-major.

    The -cos negation is folded into the packed parameters (column 1 of w1 is
    stored negated), so we use plain cos(th) here.
    """
    s = jnp.sin(th)
    c = jnp.cos(th)
    acc = jnp.zeros_like(th)
    for j in range(8):  # unrolled: 8 hidden units as scalar-broadcast FMAs (VPU)
        h = (s * p_ref[3 * j]
             + c * p_ref[3 * j + 1]
             + om * p_ref[3 * j + 2]
             + p_ref[24 + j])
        h = jnp.maximum(h, 0.0)
        acc = acc + h * p_ref[32 + j]
    return jnp.tanh(acc + p_ref[40])


def _u_t_sample_kernel(p_ref, in_ref, out_ref):
    th = in_ref[0]
    om = in_ref[1]
    eps = in_ref[2]
    mu = _compute_mu(p_ref, th, om)
    # u = mu + std*eps with std == 1; z = (u - mu)/std == eps exactly and
    # log(std) == 0, so logp needs no subtraction/division at all.
    out_ref[0] = mu + eps
    out_ref[1] = -0.5 * (eps * eps) - _HALF_LOG_2PI


def _u_t_given_kernel(p_ref, in_ref, out_ref):
    th = in_ref[0]
    om = in_ref[1]
    u = in_ref[2]
    mu = _compute_mu(p_ref, th, om)
    z = u - mu  # std == 1 -> no divide
    out_ref[0] = u
    out_ref[1] = -0.5 * (z * z) - _HALF_LOG_2PI


def _pack_params(w1, b1, w2, b2):
    """Pack all 41 parameter scalars (with -cos fold) into one f32 vector."""
    w1 = jnp.asarray(w1, jnp.float32)
    sign = jnp.asarray([1.0, -1.0, 1.0], jnp.float32)  # fold the -cos negation
    return jnp.concatenate([
        (w1 * sign).reshape(-1),                       # 24
        jnp.asarray(b1, jnp.float32).reshape(-1),      # 8
        jnp.asarray(w2, jnp.float32).reshape(-1),      # 8
        jnp.asarray(b2, jnp.float32).reshape(-1),      # 1
    ])


def u_t_forward_padded(packed, params, *, sample, tile_r=None):
    """Zero-repack fast path.

    packed: [3, r_pad, 128] f32, lane-major padded batch; rows are
            (theta, omega, eps) if sample else (theta, omega, u).
    params: [41] f32 from _pack_params.
    Returns [2, r_pad, 128] f32: row 0 = u, row 1 = logp.
    """
    n_streams, r_pad, lanes = packed.shape
    assert n_streams == 3 and lanes == _LANES and r_pad % _SUBLANES == 0

    if tile_r is None:
        tile_r = min(_MAX_TILE_R,
                     max(_SUBLANES,
                         _round_up(pl.cdiv(r_pad, _MIN_GRID_STEPS), _SUBLANES)))
        while r_pad % tile_r:      # fall back to a divisor (multiple of 8)
            tile_r -= _SUBLANES
    assert r_pad % tile_r == 0

    kernel = _u_t_sample_kernel if sample else _u_t_given_kernel
    in_spec = pl.BlockSpec((3, tile_r, _LANES), lambda i: (0, i, 0))
    out_spec = pl.BlockSpec((2, tile_r, _LANES), lambda i: (0, i, 0))
    smem_spec = pl.BlockSpec(memory_space=pltpu.MemorySpace.SMEM)

    return pl.pallas_call(
        kernel,
        out_shape=jax.ShapeDtypeStruct((2, r_pad, _LANES), jnp.float32),
        grid=(r_pad // tile_r,),
        in_specs=[smem_spec, in_spec],
        out_specs=out_spec,
        compiler_params=pltpu.CompilerParams(
            dimension_semantics=("parallel",),
            vmem_limit_bytes=32 * 1024 * 1024,
        ),
    )(params, packed)


def u_t_forward(x, w1, b1, w2, b2, eps=None, u=None):
    """x: [B,2] f32; w1: [8,3]; b1: [8]; w2: [1,8]; b2: [1].

    If u is None, eps ([B,1] standard-normal noise) must be provided and the
    control is sampled as mu + std*eps; otherwise u ([B,1]) is used directly.
    Returns (u, logp), both [B,1] f32.
    """
    x = jnp.asarray(x, jnp.float32)
    B = x.shape[0]

    sample = u is None
    if sample:
        if eps is None:
            raise ValueError("eps must be provided when u is None")
        third = jnp.asarray(eps, jnp.float32).reshape(-1)
    else:
        third = jnp.asarray(u, jnp.float32).reshape(-1)

    # Lane-major padded layout: rows padded to a multiple of 8 sublanes, tiles
    # sized so the grid has >= _MIN_GRID_STEPS steps when the batch allows.
    r8 = max(_SUBLANES, _round_up(pl.cdiv(B, _LANES), _SUBLANES))
    tile_r = min(_MAX_TILE_R,
                 max(_SUBLANES, _round_up(pl.cdiv(r8, _MIN_GRID_STEPS), _SUBLANES)))
    r_pad = _round_up(r8, tile_r)
    n_pad = r_pad * _LANES

    # One fused stack + pad + reshape instead of three separate lane repacks.
    cols = jnp.stack((x[:, 0], x[:, 1], third), axis=0)            # [3, B]
    packed = jnp.pad(cols, ((0, 0), (0, n_pad - B))).reshape(3, r_pad, _LANES)

    params = _pack_params(w1, b1, w2, b2)
    out = u_t_forward_padded(packed, params, sample=sample, tile_r=tile_r)

    flat = out.reshape(2, n_pad)[:, :B]                            # single unpad slice
    return flat[0].reshape(B, 1), flat[1].reshape(B, 1)


def _reference_forward(x, w1, b1, w2, b2, eps=None, u=None):
    """Pure-JAX reference mirroring the PyTorch module."""
    xyw = jnp.stack((jnp.sin(x[:, 0]), -jnp.cos(x[:, 0]), x[:, 1]), axis=1)  # [B,3]
    h = jnp.maximum(xyw @ w1.T + b1, 0.0)
    mu = jnp.tanh(h @ w2.T + b2)                     # [B,1]
    if u is None:
        u = mu + _STD * eps
    z = (u - mu) / _STD
    logp = -0.5 * z * z - math.log(_STD) - _HALF_LOG_2PI
    return u, logp


if __name__ == "__main__":
    key = jax.random.PRNGKey(0)
    k_x, k_w1, k_b1, k_w2, k_b2, k_eps, k_x2, k_eps2 = jax.random.split(key, 8)

    # Deterministic parameter init mirroring PyTorch's default Linear init:
    # U(-1/sqrt(fan_in), 1/sqrt(fan_in)).
    in1, hid, out = 3, 8, 1
    bnd1 = 1.0 / math.sqrt(in1)
    bnd2 = 1.0 / math.sqrt(hid)
    w1 = jax.random.uniform(k_w1, (hid, in1), jnp.float32, -bnd1, bnd1)
    b1 = jax.random.uniform(k_b1, (hid,), jnp.float32, -bnd1, bnd1)
    w2 = jax.random.uniform(k_w2, (out, hid), jnp.float32, -bnd2, bnd2)
    b2 = jax.random.uniform(k_b2, (out,), jnp.float32, -bnd2, bnd2)

    # --- small batch, sampling path (u=None) ---
    B = 8
    x = jax.random.normal(k_x, (B, 2), jnp.float32)
    eps = jax.random.normal(k_eps, (B, 1), jnp.float32)

    u_k, logp_k = u_t_forward(x, w1, b1, w2, b2, eps=eps, u=None)
    jax.block_until_ready((u_k, logp_k))
    u_r, logp_r = _reference_forward(x, w1, b1, w2, b2, eps=eps, u=None)
    assert jnp.allclose(u_k, u_r, atol=1e-5), "u mismatch (sample path)"
    assert jnp.allclose(logp_k, logp_r, atol=1e-5), "logp mismatch (sample path)"

    # --- small batch, explicit-u path ---
    u_given = jax.random.normal(jax.random.PRNGKey(42), (B, 1), jnp.float32)
    u_k2, logp_k2 = u_t_forward(x, w1, b1, w2, b2, u=u_given)
    jax.block_until_ready((u_k2, logp_k2))
    u_r2, logp_r2 = _reference_forward(x, w1, b1, w2, b2, u=u_given)
    assert jnp.allclose(u_k2, u_r2, atol=1e-5), "u mismatch (given path)"
    assert jnp.allclose(logp_k2, logp_r2, atol=1e-5), "logp mismatch (given path)"

    # --- batch not a multiple of 128 (exercises sublane/lane padding) ---
    B2 = 300
    x2 = jax.random.normal(k_x2, (B2, 2), jnp.float32)
    eps2 = jax.random.normal(k_eps2, (B2, 1), jnp.float32)
    u_k3, logp_k3 = u_t_forward(x2, w1, b1, w2, b2, eps=eps2, u=None)
    jax.block_until_ready((u_k3, logp_k3))
    u_r3, logp_r3 = _reference_forward(x2, w1, b1, w2, b2, eps=eps2, u=None)
    assert jnp.allclose(u_k3, u_r3, atol=1e-5), "u mismatch (padded path)"
    assert jnp.allclose(logp_k3, logp_r3, atol=1e-5), "logp mismatch (padded path)"

    print("KERNEL_OK")
</pallas_src>

<mosaic_0001>
module attributes {stable_mosaic.version = 11 : i64} {
  func.func @_u_t_sample_kernel(%arg0: i32, %arg1: memref<41xf32, #tpu.memory_space<smem>>, %arg2: memref<3x8x128xf32, #tpu.memory_space<vmem>>, %arg3: memref<2x8x128xf32, #tpu.memory_space<vmem>>) attributes {dimension_semantics = [#tpu.dimension_semantics<parallel>], iteration_bounds = array<i64: 1>, scalar_prefetch = 0 : i64, scratch_operands = 0 : i64, tpu.core_type = #tpu.core_type<tc>, window_params = [{transform_indices = @transform_0, window_bounds = array<i64: 41>}, {transform_indices = @transform_1, window_bounds = array<i64: 3, 8, 128>}, {transform_indices = @transform_2, window_bounds = array<i64: 2, 8, 128>}]} {
    %c0 = arith.constant 0 : index
    %c0_0 = arith.constant 0 : index
    %c0_1 = arith.constant 0 : index
    %0 = vector.load %arg2[%c0, %c0_0, %c0_1] : memref<3x8x128xf32, #tpu.memory_space<vmem>>, vector<1x8x128xf32>
    %1 = vector.shape_cast %0 : vector<1x8x128xf32> to vector<8x128xf32>
    %c1 = arith.constant 1 : index
    %c0_2 = arith.constant 0 : index
    %c0_3 = arith.constant 0 : index
    %2 = vector.load %arg2[%c1, %c0_2, %c0_3] : memref<3x8x128xf32, #tpu.memory_space<vmem>>, vector<1x8x128xf32>
    %3 = vector.shape_cast %2 : vector<1x8x128xf32> to vector<8x128xf32>
    %c2 = arith.constant 2 : index
    %c0_4 = arith.constant 0 : index
    %c0_5 = arith.constant 0 : index
    %4 = vector.load %arg2[%c2, %c0_4, %c0_5] : memref<3x8x128xf32, #tpu.memory_space<vmem>>, vector<1x8x128xf32>
    %5 = vector.shape_cast %4 : vector<1x8x128xf32> to vector<8x128xf32>
    %6 = math.sin %1 : vector<8x128xf32>
    %7 = math.cos %1 : vector<8x128xf32>
    %cst = arith.constant 0.000000e+00 : f32
    %8 = vector.broadcast %cst : f32 to vector<8x128xf32>
    %c0_6 = arith.constant 0 : index
    %9 = memref.load %arg1[%c0_6] : memref<41xf32, #tpu.memory_space<smem>>
    %10 = vector.broadcast %9 : f32 to vector<8x128xf32>
    %11 = arith.mulf %6, %10 : vector<8x128xf32>
    %c1_7 = arith.constant 1 : index
    %12 = memref.load %arg1[%c1_7] : memref<41xf32, #tpu.memory_space<smem>>
    %13 = vector.broadcast %12 : f32 to vector<8x128xf32>
    %14 = arith.mulf %7, %13 : vector<8x128xf32>
    %15 = arith.addf %11, %14 : vector<8x128xf32>
    %c2_8 = arith.constant 2 : index
    %16 = memref.load %arg1[%c2_8] : memref<41xf32, #tpu.memory_space<smem>>
    %17 = vector.broadcast %16 : f32 to vector<8x128xf32>
    %18 = arith.mulf %3, %17 : vector<8x128xf32>
    %19 = arith.addf %15, %18 : vector<8x128xf32>
    %c24 = arith.constant 24 : index
    %20 = memref.load %arg1[%c24] : memref<41xf32, #tpu.memory_space<smem>>
    %21 = vector.broadcast %20 : f32 to vector<8x128xf32>
    %22 = arith.addf %19, %21 : vector<8x128xf32>
    %cst_9 = arith.constant 0.000000e+00 : f32
    %23 = vector.broadcast %cst_9 : f32 to vector<8x128xf32>
    %24 = arith.maximumf %22, %23 : vector<8x128xf32>
    %c32 = arith.constant 32 : index
    %25 = memref.load %arg1[%c32] : memref<41xf32, #tpu.memory_space<smem>>
    %26 = vector.broadcast %25 : f32 to vector<8x128xf32>
    %27 = arith.mulf %24, %26 : vector<8x128xf32>
    %28 = arith.addf %8, %27 : vector<8x128xf32>
    %c3 = arith.constant 3 : index
    %29 = memref.load %arg1[%c3] : memref<41xf32, #tpu.memory_space<smem>>
    %30 = vector.broadcast %29 : f32 to vector<8x128xf32>
    %31 = arith.mulf %6, %30 : vector<8x128xf32>
    %c4 = arith.constant 4 : index
    %32 = memref.load %arg1[%c4] : memref<41xf32, #tpu.memory_space<smem>>
    %33 = vector.broadcast %32 : f32 to vector<8x128xf32>
    %34 = arith.mulf %7, %33 : vector<8x128xf32>
    %35 = arith.addf %31, %34 : vector<8x128xf32>
    %c5 = arith.constant 5 : index
    %36 = memref.load %arg1[%c5] : memref<41xf32, #tpu.memory_space<smem>>
    %37 = vector.broadcast %36 : f32 to vector<8x128xf32>
    %38 = arith.mulf %3, %37 : vector<8x128xf32>
    %39 = arith.addf %35, %38 : vector<8x128xf32>
    %c25 = arith.constant 25 : index
    %40 = memref.load %arg1[%c25] : memref<41xf32, #tpu.memory_space<smem>>
    %41 = vector.broadcast %40 : f32 to vector<8x128xf32>
    %42 = arith.addf %39, %41 : vector<8x128xf32>
    %cst_10 = arith.constant 0.000000e+00 : f32
    %43 = vector.broadcast %cst_10 : f32 to vector<8x128xf32>
    %44 = arith.maximumf %42, %43 : vector<8x128xf32>
    %c33 = arith.constant 33 : index
    %45 = memref.load %arg1[%c33] : memref<41xf32, #tpu.memory_space<smem>>
    %46 = vector.broadcast %45 : f32 to vector<8x128xf32>
    %47 = arith.mulf %44, %46 : vector<8x128xf32>
    %48 = arith.addf %28, %47 : vector<8x128xf32>
    %c6 = arith.constant 6 : index
    %49 = memref.load %arg1[%c6] : memref<41xf32, #tpu.memory_space<smem>>
    %50 = vector.broadcast %49 : f32 to vector<8x128xf32>
    %51 = arith.mulf %6, %50 : vector<8x128xf32>
    %c7 = arith.constant 7 : index
    %52 = memref.load %arg1[%c7] : memref<41xf32, #tpu.memory_space<smem>>
    %53 = vector.broadcast %52 : f32 to vector<8x128xf32>
    %54 = arith.mulf %7, %53 : vector<8x128xf32>
    %55 = arith.addf %51, %54 : vector<8x128xf32>
    %c8 = arith.constant 8 : index
    %56 = memref.load %arg1[%c8] : memref<41xf32, #tpu.memory_space<smem>>
    %57 = vector.broadcast %56 : f32 to vector<8x128xf32>
    %58 = arith.mulf %3, %57 : vector<8x128xf32>
    %59 = arith.addf %55, %58 : vector<8x128xf32>
    %c26 = arith.constant 26 : index
    %60 = memref.load %arg1[%c26] : memref<41xf32, #tpu.memory_space<smem>>
    %61 = vector.broadcast %60 : f32 to vector<8x128xf32>
    %62 = arith.addf %59, %61 : vector<8x128xf32>
    %cst_11 = arith.constant 0.000000e+00 : f32
    %63 = vector.broadcast %cst_11 : f32 to vector<8x128xf32>
    %64 = arith.maximumf %62, %63 : vector<8x128xf32>
    %c34 = arith.constant 34 : index
    %65 = memref.load %arg1[%c34] : memref<41xf32, #tpu.memory_space<smem>>
    %66 = vector.broadcast %65 : f32 to vector<8x128xf32>
    %67 = arith.mulf %64, %66 : vector<8x128xf32>
    %68 = arith.addf %48, %67 : vector<8x128xf32>
    %c9 = arith.constant 9 : index
    %69 = memref.load %arg1[%c9] : memref<41xf32, #tpu.memory_space<smem>>
    %70 = vector.broadcast %69 : f32 to vector<8x128xf32>
    %71 = arith.mulf %6, %70 : vector<8x128xf32>
    %c10 = arith.constant 10 : index
    %72 = memref.load %arg1[%c10] : memref<41xf32, #tpu.memory_space<smem>>
    %73 = vector.broadcast %72 : f32 to vector<8x128xf32>
    %74 = arith.mulf %7, %73 : vector<8x128xf32>
    %75 = arith.addf %71, %74 : vector<8x128xf32>
    %c11 = arith.constant 11 : index
    %76 = memref.load %arg1[%c11] : memref<41xf32, #tpu.memory_space<smem>>
    %77 = vector.broadcast %76 : f32 to vector<8x128xf32>
    %78 = arith.mulf %3, %77 : vector<8x128xf32>
    %79 = arith.addf %75, %78 : vector<8x128xf32>
    %c27 = arith.constant 27 : index
    %80 = memref.load %arg1[%c27] : memref<41xf32, #tpu.memory_space<smem>>
    %81 = vector.broadcast %80 : f32 to vector<8x128xf32>
    %82 = arith.addf %79, %81 : vector<8x128xf32>
    %cst_12 = arith.constant 0.000000e+00 : f32
    %83 = vector.broadcast %cst_12 : f32 to vector<8x128xf32>
    %84 = arith.maximumf %82, %83 : vector<8x128xf32>
    %c35 = arith.constant 35 : index
    %85 = memref.load %arg1[%c35] : memref<41xf32, #tpu.memory_space<smem>>
    %86 = vector.broadcast %85 : f32 to vector<8x128xf32>
    %87 = arith.mulf %84, %86 : vector<8x128xf32>
    %88 = arith.addf %68, %87 : vector<8x128xf32>
    %c12 = arith.constant 12 : index
    %89 = memref.load %arg1[%c12] : memref<41xf32, #tpu.memory_space<smem>>
    %90 = vector.broadcast %89 : f32 to vector<8x128xf32>
    %91 = arith.mulf %6, %90 : vector<8x128xf32>
    %c13 = arith.constant 13 : index
    %92 = memref.load %arg1[%c13] : memref<41xf32, #tpu.memory_space<smem>>
    %93 = vector.broadcast %92 : f32 to vector<8x128xf32>
    %94 = arith.mulf %7, %93 : vector<8x128xf32>
    %95 = arith.addf %91, %94 : vector<8x128xf32>
    %c14 = arith.constant 14 : index
    %96 = memref.load %arg1[%c14] : memref<41xf32, #tpu.memory_space<smem>>
    %97 = vector.broadcast %96 : f32 to vector<8x128xf32>
    %98 = arith.mulf %3, %97 : vector<8x128xf32>
    %99 = arith.addf %95, %98 : vector<8x128xf32>
    %c28 = arith.constant 28 : index
    %100 = memref.load %arg1[%c28] : memref<41xf32, #tpu.memory_space<smem>>
    %101 = vector.broadcast %100 : f32 to vector<8x128xf32>
    %102 = arith.addf %99, %101 : vector<8x128xf32>
    %cst_13 = arith.constant 0.000000e+00 : f32
    %103 = vector.broadcast %cst_13 : f32 to vector<8x128xf32>
    %104 = arith.maximumf %102, %103 : vector<8x128xf32>
    %c36 = arith.constant 36 : index
    %105 = memref.load %arg1[%c36] : memref<41xf32, #tpu.memory_space<smem>>
    %106 = vector.broadcast %105 : f32 to vector<8x128xf32>
    %107 = arith.mulf %104, %106 : vector<8x128xf32>
    %108 = arith.addf %88, %107 : vector<8x128xf32>
    %c15 = arith.constant 15 : index
    %109 = memref.load %arg1[%c15] : memref<41xf32, #tpu.memory_space<smem>>
    %110 = vector.broadcast %109 : f32 to vector<8x128xf32>
    %111 = arith.mulf %6, %110 : vector<8x128xf32>
    %c16 = arith.constant 16 : index
    %112 = memref.load %arg1[%c16] : memref<41xf32, #tpu.memory_space<smem>>
    %113 = vector.broadcast %112 : f32 to vector<8x128xf32>
    %114 = arith.mulf %7, %113 : vector<8x128xf32>
    %115 = arith.addf %111, %114 : vector<8x128xf32>
    %c17 = arith.constant 17 : index
    %116 = memref.load %arg1[%c17] : memref<41xf32, #tpu.memory_space<smem>>
    %117 = vector.broadcast %116 : f32 to vector<8x128xf32>
    %118 = arith.mulf %3, %117 : vector<8x128xf32>
    %119 = arith.addf %115, %118 : vector<8x128xf32>
    %c29 = arith.constant 29 : index
    %120 = memref.load %arg1[%c29] : memref<41xf32, #tpu.memory_space<smem>>
    %121 = vector.broadcast %120 : f32 to vector<8x128xf32>
    %122 = arith.addf %119, %121 : vector<8x128xf32>
    %cst_14 = arith.constant 0.000000e+00 : f32
    %123 = vector.broadcast %cst_14 : f32 to vector<8x128xf32>
    %124 = arith.maximumf %122, %123 : vector<8x128xf32>
    %c37 = arith.constant 37 : index
    %125 = memref.load %arg1[%c37] : memref<41xf32, #tpu.memory_space<smem>>
    %126 = vector.broadcast %125 : f32 to vector<8x128xf32>
    %127 = arith.mulf %124, %126 : vector<8x128xf32>
    %128 = arith.addf %108, %127 : vector<8x128xf32>
    %c18 = arith.constant 18 : index
    %129 = memref.load %arg1[%c18] : memref<41xf32, #tpu.memory_space<smem>>
    %130 = vector.broadcast %129 : f32 to vector<8x128xf32>
    %131 = arith.mulf %6, %130 : vector<8x128xf32>
    %c19 = arith.constant 19 : index
    %132 = memref.load %arg1[%c19] : memref<41xf32, #tpu.memory_space<smem>>
    %133 = vector.broadcast %132 : f32 to vector<8x128xf32>
    %134 = arith.mulf %7, %133 : vector<8x128xf32>
    %135 = arith.addf %131, %134 : vector<8x128xf32>
    %c20 = arith.constant 20 : index
    %136 = memref.load %arg1[%c20] : memref<41xf32, #tpu.memory_space<smem>>
    %137 = vector.broadcast %136 : f32 to vector<8x128xf32>
    %138 = arith.mulf %3, %137 : vector<8x128xf32>
    %139 = arith.addf %135, %138 : vector<8x128xf32>
    %c30 = arith.constant 30 : index
    %140 = memref.load %arg1[%c30] : memref<41xf32, #tpu.memory_space<smem>>
    %141 = vector.broadcast %140 : f32 to vector<8x128xf32>
    %142 = arith.addf %139, %141 : vector<8x128xf32>
    %cst_15 = arith.constant 0.000000e+00 : f32
    %143 = vector.broadcast %cst_15 : f32 to vector<8x128xf32>
    %144 = arith.maximumf %142, %143 : vector<8x128xf32>
    %c38 = arith.constant 38 : index
    %145 = memref.load %arg1[%c38] : memref<41xf32, #tpu.memory_space<smem>>
    %146 = vector.broadcast %145 : f32 to vector<8x128xf32>
    %147 = arith.mulf %144, %146 : vector<8x128xf32>
    %148 = arith.addf %128, %147 : vector<8x128xf32>
    %c21 = arith.constant 21 : index
    %149 = memref.load %arg1[%c21] : memref<41xf32, #tpu.memory_space<smem>>
    %150 = vector.broadcast %149 : f32 to vector<8x128xf32>
    %151 = arith.mulf %6, %150 : vector<8x128xf32>
    %c22 = arith.constant 22 : index
    %152 = memref.load %arg1[%c22] : memref<41xf32, #tpu.memory_space<smem>>
    %153 = vector.broadcast %152 : f32 to vector<8x128xf32>
    %154 = arith.mulf %7, %153 : vector<8x128xf32>
    %155 = arith.addf %151, %154 : vector<8x128xf32>
    %c23 = arith.constant 23 : index
    %156 = memref.load %arg1[%c23] : memref<41xf32, #tpu.memory_space<smem>>
    %157 = vector.broadcast %156 : f32 to vector<8x128xf32>
    %158 = arith.mulf %3, %157 : vector<8x128xf32>
    %159 = arith.addf %155, %158 : vector<8x128xf32>
    %c31 = arith.constant 31 : index
    %160 = memref.load %arg1[%c31] : memref<41xf32, #tpu.memory_space<smem>>
    %161 = vector.broadcast %160 : f32 to vector<8x128xf32>
    %162 = arith.addf %159, %161 : vector<8x128xf32>
    %cst_16 = arith.constant 0.000000e+00 : f32
    %163 = vector.broadcast %cst_16 : f32 to vector<8x128xf32>
    %164 = arith.maximumf %162, %163 : vector<8x128xf32>
    %c39 = arith.constant 39 : index
    %165 = memref.load %arg1[%c39] : memref<41xf32, #tpu.memory_space<smem>>
    %166 = vector.broadcast %165 : f32 to vector<8x128xf32>
    %167 = arith.mulf %164, %166 : vector<8x128xf32>
    %168 = arith.addf %148, %167 : vector<8x128xf32>
    %c40 = arith.constant 40 : index
    %169 = memref.load %arg1[%c40] : memref<41xf32, #tpu.memory_space<smem>>
    %170 = vector.broadcast %169 : f32 to vector<8x128xf32>
    %171 = arith.addf %168, %170 : vector<8x128xf32>
    %172 = math.tanh %171 : vector<8x128xf32>
    %173 = arith.addf %172, %5 : vector<8x128xf32>
    %c0_17 = arith.constant 0 : index
    %c0_18 = arith.constant 0 : index
    %c0_19 = arith.constant 0 : index
    %174 = vector.load %arg3[%c0_17, %c0_18, %c0_19] : memref<2x8x128xf32, #tpu.memory_space<vmem>>, vector<1x8x128xf32>
    %175 = vector.shape_cast %174 : vector<1x8x128xf32> to vector<8x128xf32>
    %176 = vector.shape_cast %173 : vector<8x128xf32> to vector<1x8x128xf32>
    tpu.vector_store %arg3[%c0_17, %c0_18, %c0_19], %176 {strides = array<i32>} : memref<2x8x128xf32, #tpu.memory_space<vmem>>, vector<1x8x128xf32>,
    %177 = arith.mulf %5, %5 : vector<8x128xf32>
    %cst_20 = arith.constant -5.000000e-01 : f32
    %178 = vector.broadcast %cst_20 : f32 to vector<8x128xf32>
    %179 = arith.mulf %178, %177 : vector<8x128xf32>
    %cst_21 = arith.constant 0.918938517 : f32
    %180 = vector.broadcast %cst_21 : f32 to vector<8x128xf32>
    %181 = arith.subf %179, %180 : vector<8x128xf32>
    %c1_22 = arith.constant 1 : index
    %c0_23 = arith.constant 0 : index
    %c0_24 = arith.constant 0 : index
    %182 = vector.load %arg3[%c1_22, %c0_23, %c0_24] : memref<2x8x128xf32, #tpu.memory_space<vmem>>, vector<1x8x128xf32>
    %183 = vector.shape_cast %182 : vector<1x8x128xf32> to vector<8x128xf32>
    %184 = vector.shape_cast %181 : vector<8x128xf32> to vector<1x8x128xf32>
    tpu.vector_store %arg3[%c1_22, %c0_23, %c0_24], %184 {strides = array<i32>} : memref<2x8x128xf32, #tpu.memory_space<vmem>>, vector<1x8x128xf32>,
    return
  }
  func.func @transform_0(%arg0: i32) -> i32 {
    %c0_i32 = arith.constant 0 : i32
    %c0_i32_0 = arith.constant 0 : i32
    return %c0_i32 : i32
  }
  func.func @transform_1(%arg0: i32) -> (i32, i32, i32) {
    %c0_i32 = arith.constant 0 : i32
    %c0_i32_0 = arith.constant 0 : i32
    %c0_i32_1 = arith.constant 0 : i32
    return %c0_i32, %arg0, %c0_i32_0 : i32, i32, i32
  }
  func.func @transform_2(%arg0: i32) -> (i32, i32, i32) {
    %c0_i32 = arith.constant 0 : i32
    %c0_i32_0 = arith.constant 0 : i32
    %c0_i32_1 = arith.constant 0 : i32
    return %c0_i32, %arg0, %c0_i32_0 : i32, i32, i32
  }
}

</mosaic_0001>

<llo_original>
// kernel: tpu_custom_call.1
$region0: #{tpu_custom_call.1}
  #allocation0 [shape = 'u32[]', space=smem, size = 0x4, offset = 0x4, fixed_abs, tag = 'smem constant byte address 0x4 - core index']
  #allocation1 [shape = 'u32[144,128]{1,0:T(1,128)}', space=vmem, size = 0x12000, scoped, tag = 'internal scratch']
  %s0 = inlined_call_operand.hbm [shape: f32[41], index: 0, kind: input, shape index: {}]
  %s1 = inlined_call_operand.hbm [shape: f32[3,8,128], index: 1, kind: input, shape index: {}]
  %s2 = inlined_call_operand.hbm [shape: f32[2,8,128], index: 2, kind: output, shape index: {}]
  %s3 = sld [smem:[#allocation0]]
  $region26: #{tpu_custom_call.1} parent=0
    _
  %s5 = ssub.s32 1, %s3
  %s6 = scalar_select 0, %s5, %s3
  $region1: #{tpu_custom_call.1} parent=0
    #allocation2 [shape = 'u8[512]{0}', space=smem, size = 0x200, scoped, tag = 'input window, operand 0, single buffered']
    #allocation3 [shape = 's32[1]{0}', space=sflag, size = 0x4, scoped, tag = 'scoped memory for tpu_custom_call.1']
    #allocation4 [shape = 's32[1]{0}', space=sflag, size = 0x4, scoped, tag = 'scoped memory for tpu_custom_call.1']
    #allocation5 [shape = 's32[1]{0}', space=sflag, size = 0x4, scoped, tag = 'scoped memory for tpu_custom_call.1']
    #allocation6 [shape = 'u8[12288]{0}', space=vmem, size = 0x3000, scoped, tag = 'input window, operand 1, single buffered']
    #allocation7 [shape = 'u8[8192]{0}', space=vmem, size = 0x2000, scoped, tag = 'output window, operand 0, single buffered']
    %7 = vsyncpa [#allocation5], 0
    %8 = vsyncpa [#allocation3], 0
    %9 = vsyncpa [#allocation4], 0
    // Predicated region
    $region2: #{tpu_custom_call.1} parent=1 // pred_check
      _
    $region3: #{tpu_custom_call.1} parent=1 // pred_check_branch
      %11 = sbr.rel (0) target = $region5
    $region4: #{tpu_custom_call.1} parent=1 // pred_region
      %s13 = ssub.s32 16, 16
      %14 = vsyncadd [#allocation5], %s13
      %17 = dma.hbm_to_smem %s0, 16, [#allocation2], [#allocation5]
    $region5: #{tpu_custom_call.1} parent=1 // pred_fallthru
      _
    // Predicated region
    $region6: #{tpu_custom_call.1} parent=1 // pred_check
      _
    $region7: #{tpu_custom_call.1} parent=1 // pred_check_branch
      %19 = sbr.rel (0) target = $region9
    $region8: #{tpu_custom_call.1} parent=1 // pred_region
      %s21 = ssub.s32 384, 384
      %22 = vsyncadd [#allocation3], %s21
      %s23 = sshll.u32 [#allocation6], 4
      %s24 = int_to_ptr.vmem [resolvable:$true] %s23
      %29 = dma.hbm_to_vmem [thread:$0]  %s1, 384, %s24, [#allocation3], 128, 128, 8
    $region9: #{tpu_custom_call.1} parent=1 // pred_fallthru
      _
    // Predicated region
    $region10: #{tpu_custom_call.1} parent=1 // pred_check
      _
    $region11: #{tpu_custom_call.1} parent=1 // pred_check_branch
      %31 = sbr.rel (0) target = $region13
    $region12: #{tpu_custom_call.1} parent=1 // pred_region
      %32 = dma.done [#allocation5], 16
    $region13: #{tpu_custom_call.1} parent=1 // pred_fallthru
      _
    // Predicated region
    $region14: #{tpu_custom_call.1} parent=1 // pred_check
      _
    $region15: #{tpu_custom_call.1} parent=1 // pred_check_branch
      %34 = sbr.rel (0) target = $region17
    $region16: #{tpu_custom_call.1} parent=1 // pred_region
      %35 = dma.done [#allocation3], 384
    $region17: #{tpu_custom_call.1} parent=1 // pred_fallthru
      _
    %36 = sfence
    %v37 = vld [vmem:[#allocation6] sm:$0xff]
    %s38 = scalar_lea.vmem [#allocation6], 8
    %v39 = vld [vmem:[%s38] sm:$0xff]
    %s40 = scalar_lea.vmem [#allocation6], 16
    %v41 = vld [vmem:[%s40] sm:$0xff]
    %v42 = vand.u32 2147483647, %v37
    %vm43 = vcmp.le.f32.partialorder %v42, 0.7853982
    %vm44 = vcmp.lt.s32.totalorder %v37, 0
    %v45 = vand.u32 %v37, 2139095040
    %v46 = vshrl.u32 %v45, 23
    %v47 = vsub.s32 %v46, 127
    %v48 = vand.u32 2147483647, %v37
    %v49 = vand.u32 %v48, 8388607
    %v50 = vor.u32 %v49, 8388608
    %v51 = vsub.s32 0, %v50
    %v52 = vadd.s32 %v47, 1
    %vm53 = vcmp.gt.s32.totalorder %v52, 0
    %v54 = vsel %vm53, %v52, 0
    %v55 = vshrl.u32 %v54, 5
    %v56 = vand.u32 %v54, 31
    %v57 = vsub.s32 32, %v56
    %v58 = vshrl.u32 683565275, %v57
    %v59 = vshll.u32 683565275, %v56
    %v60 = vshrl.u32 2475754826, %v57
    %v61 = vor.u32 %v59, %v60
    %v62 = vshll.u32 2475754826, %v56
    %v63 = vshrl.u32 2131351028, %v57
    %v64 = vor.u32 %v62, %v63
    %v65 = vshll.u32 2131351028, %v56
    %v66 = vshrl.u32 2102212464, %v57
    %v67 = vor.u32 %v65, %v66
    %v68 = vshll.u32 2102212464, %v56
    %v69 = vshrl.u32 920167782, %v57
    %v70 = vor.u32 %v68, %v69
    %v71 = vshll.u32 920167782, %v56
    %v72 = vshrl.u32 1326507024, %v57
    %v73 = vor.u32 %v71, %v72
    %vm74 = vcmp.lt.s32.totalorder %v55, 1
    %vm75 = vcmp.lt.s32.totalorder %v55, 2
    %vm76 = vcmp.lt.s32.totalorder %v55, 3
    %vm77 = vcmp.lt.s32.totalorder %v55, 4
    %v78 = vsel %vm74, %v58, %v61
    %v79 = vsel %vm77, %v67, 2102212464
    %v80 = vsel %vm76, %v64, %v79
    %v81 = vsel %vm75, %v78, %v80
    %v82 = vsel %vm74, %v61, %v64
    %v83 = vsel %vm77, %v70, 920167782
    %v84 = vsel %vm76, %v67, %v83
    %v85 = vsel %vm75, %v82, %v84
    %v86 = vsel %vm74, %v64, %v67
    %v87 = vsel %vm77, %v73, 1326507024
    %v88 = vsel %vm76, %v70, %v87
    %v89 = vsel %vm75, %v86, %v88
    %v90 = vshll.u32 %v50, 8
    %v91 = vmul.u32.u64.compose %v90, %v89
    %v92 = vextract.low.u32 %v91
    %v93 = vextract.high.u32 %v91
    %v94 = vmul.u32.u64.compose %v90, %v85
    %v95 = vextract.low.u32 %v94
    %v96 = vextract.high.u32 %v94
    %v97 = vmul.u32 %v90, %v81
    %v98 = vadd.s32 %v93, %v95
    %vm99 = vc.u32 %v93, %v95
    %v100 = vadd.s32 %v96, 1
    %v101 = vsel %vm99, %v100, %v96
    %v102 = vadd.s32 %v97, %v101
    %v103 = vadd.s32 %v102, 536870912
    %v104 = vshrl.u32 %v103, 30
    %v105 = vshll.u32 %v104, 30
    %v106 = vsub.s32 %v102, %v105
    %vm107 = vcmp.lt.s32.totalorder %v106, 0
    %v108 = vsub.s32 0, %v106
    %v109 = vsel %vm107, %v108, %v106
    %v110 = vclz %v109
    %v111 = vsub.s32 %v110, 2
    %vm112 = vcmp.gt.s32.totalorder 0, %v111
    %v113 = vsel %vm112, 0, %v111
    %v114 = vsub.s32 32, %v113
    %v115 = vshll.u32 %v106, %v113
    %v116 = vshrl.u32 %v98, %v114
    %v117 = vor.u32 %v115, %v116
    %v118 = vsub.s32 4294967266, %v113
    %v119 = vadd.s32 %v118, 127
    %v120 = vshll.u32 %v119, 23
    %v121 = vor.u32 4788187, %v120
    %v122 = vand.u32 2147483647, %v121
    %v124 = vcvt.s32.f32 %v117
    %v125 = vmul.f32 %v124, %v122
    %v126 = vxor.u32 %v125, 2147483648
    %v127 = vsel %vm44, %v126, %v125
    %v128 = vsub.s32 4, %v104
    %v129 = vsel %vm44, %v128, %v104
    %v130 = vsel %vm43, %v37, %v127
    %v131 = vsel %vm43, 0, %v129
    %v132 = vcosq.f32.pop %v130
    %v133 = vsinq.f32.pop %v130
    %vm134 = vweird.f32 %v37
    %v135 = vadd.s32 %v131, 3
    %v136 = vand.u32 %v135, 3
    %vm137 = vcmp.lt.s32.totalorder %v136, 2
    %vm138 = vcmp.eq.s32.totalorder %v136, 0
    %v139 = vxor.u32 %v133, 2147483648
    %v140 = vsel %vm138, %v132, %v139
    %vm141 = vcmp.eq.s32.totalorder %v136, 2
    %v142 = vxor.u32 %v132, 2147483648
    %v143 = vsel %vm141, %v142, %v133
    %v144 = vsel %vm137, %v140, %v143
    %v145 = vsel %vm134, nan, %v144
    %v146 = vand.u32 2147483647, %v37
    %vm147 = vcmp.le.f32.partialorder %v146, 0.7853982
    %vm148 = vcmp.lt.s32.totalorder %v37, 0
    %v149 = vand.u32 %v37, 2139095040
    %v150 = vshrl.u32 %v149, 23
    %v151 = vsub.s32 %v150, 127
    %v152 = vand.u32 2147483647, %v37
    %v153 = vand.u32 %v152, 8388607
    %v154 = vor.u32 %v153, 8388608
    %v155 = vsub.s32 0, %v154
    %v156 = vadd.s32 %v151, 1
    %vm157 = vcmp.gt.s32.totalorder %v156, 0
    %v158 = vsel %vm157, %v156, 0
    %v159 = vshrl.u32 %v158, 5
    %v160 = vand.u32 %v158, 31
    %v161 = vsub.s32 32, %v160
    %v162 = vshrl.u32 683565275, %v161
    %v163 = vshll.u32 683565275, %v160
    %v164 = vshrl.u32 2475754826, %v161
    %v165 = vor.u32 %v163, %v164
    %v166 = vshll.u32 2475754826, %v160
    %v167 = vshrl.u32 2131351028, %v161
    %v168 = vor.u32 %v166, %v167
    %v169 = vshll.u32 2131351028, %v160
    %v170 = vshrl.u32 2102212464, %v161
    %v171 = vor.u32 %v169, %v170
    %v172 = vshll.u32 2102212464, %v160
    %v173 = vshrl.u32 920167782, %v161
    %v174 = vor.u32 %v172, %v173
    %v175 = vshll.u32 920167782, %v160
    %v176 = vshrl.u32 1326507024, %v161
    %v177 = vor.u32 %v175, %v176
    %vm178 = vcmp.lt.s32.totalorder %v159, 1
    %vm179 = vcmp.lt.s32.totalorder %v159, 2
    %vm180 = vcmp.lt.s32.totalorder %v159, 3
    %vm181 = vcmp.lt.s32.totalorder %v159, 4
    %v182 = vsel %vm178, %v162, %v165
    %v183 = vsel %vm181, %v171, 2102212464
    %v184 = vsel %vm180, %v168, %v183
    %v185 = vsel %vm179, %v182, %v184
    %v186 = vsel %vm178, %v165, %v168
    %v187 = vsel %vm181, %v174, 920167782
    %v188 = vsel %vm180, %v171, %v187
    %v189 = vsel %vm179, %v186, %v188
    %v190 = vsel %vm178, %v168, %v171
    %v191 = vsel %vm181, %v177, 1326507024
    %v192 = vsel %vm180, %v174, %v191
    %v193 = vsel %vm179, %v190, %v192
    %v194 = vshll.u32 %v154, 8
    %v195 = vmul.u32.u64.compose %v194, %v193
    %v196 = vextract.low.u32 %v195
    %v197 = vextract.high.u32 %v195
    %v198 = vmul.u32.u64.compose %v194, %v189
    %v199 = vextract.low.u32 %v198
    %v200 = vextract.high.u32 %v198
    %v201 = vmul.u32 %v194, %v185
    %v202 = vadd.s32 %v197, %v199
    %vm203 = vc.u32 %v197, %v199
    %v204 = vadd.s32 %v200, 1
    %v205 = vsel %vm203, %v204, %v200
    %v206 = vadd.s32 %v201, %v205
    %v207 = vadd.s32 %v206, 536870912
    %v208 = vshrl.u32 %v207, 30
    %v209 = vshll.u32 %v208, 30
    %v210 = vsub.s32 %v206, %v209
    %vm211 = vcmp.lt.s32.totalorder %v210, 0
    %v212 = vsub.s32 0, %v210
    %v213 = vsel %vm211, %v212, %v210
    %v214 = vclz %v213
    %v215 = vsub.s32 %v214, 2
    %vm216 = vcmp.gt.s32.totalorder 0, %v215
    %v217 = vsel %vm216, 0, %v215
    %v218 = vsub.s32 32, %v217
    %v219 = vshll.u32 %v210, %v217
    %v220 = vshrl.u32 %v202, %v218
    %v221 = vor.u32 %v219, %v220
    %v222 = vsub.s32 4294967266, %v217
    %v223 = vadd.s32 %v222, 127
    %v224 = vshll.u32 %v223, 23
    %v225 = vor.u32 4788187, %v224
    %v226 = vand.u32 2147483647, %v225
    %v228 = vcvt.s32.f32 %v221
    %v229 = vmul.f32 %v228, %v226
    %v230 = vxor.u32 %v229, 2147483648
    %v231 = vsel %vm148, %v230, %v229
    %v232 = vsub.s32 4, %v208
    %v233 = vsel %vm148, %v232, %v208
    %v234 = vsel %vm147, %v37, %v231
    %v235 = vsel %vm147, 0, %v233
    %v236 = vcosq.f32.pop %v234
    %v237 = vsinq.f32.pop %v234
    %vm238 = vweird.f32 %v37
    %v239 = vand.u32 %v235, 3
    %vm240 = vcmp.lt.s32.totalorder %v239, 2
    %vm241 = vcmp.eq.s32.totalorder %v239, 0
    %v242 = vxor.u32 %v237, 2147483648
    %v243 = vsel %vm241, %v236, %v242
    %vm244 = vcmp.eq.s32.totalorder %v239, 2
    %v245 = vxor.u32 %v236, 2147483648
    %v246 = vsel %vm244, %v245, %v237
    %v247 = vsel %vm240, %v243, %v246
    %v248 = vsel %vm238, nan, %v247
    %s249 = sld [smem:[#allocation2]]
    %v250 = vstv %s249
    %v251 = vmul.f32 %v145, %v250
    %s252 = sld [smem:[#allocation2 + $0x1]]
    %v253 = vstv %s252
    %v254 = vmul.f32 %v248, %v253
    %v255 = vadd.f32 %v251, %v254
    %s256 = sld [smem:[#allocation2 + $0x2]]
    %v257 = vstv %s256
    %v258 = vmul.f32 %v39, %v257
    %v259 = vadd.f32 %v255, %v258
    %s260 = sld [smem:[#allocation2 + $0x18]]
    %v261 = vstv %s260
    %v262 = vadd.f32 %v259, %v261
    %v263 = vmax.f32 %v262, 0.0
    %s264 = sld [smem:[#allocation2 + $0x20]]
    %v265 = vstv %s264
    %v266 = vmul.f32 %v263, %v265
    %v267 = vadd.f32 %v266, 0.0
    %s268 = sld [smem:[#allocation2 + $0x3]]
    %v269 = vstv %s268
    %v270 = vmul.f32 %v145, %v269
    %s271 = sld [smem:[#allocation2 + $0x4]]
    %v272 = vstv %s271
    %v273 = vmul.f32 %v248, %v272
    %v274 = vadd.f32 %v270, %v273
    %s275 = sld [smem:[#allocation2 + $0x5]]
    %v276 = vstv %s275
    %v277 = vmul.f32 %v39, %v276
    %v278 = vadd.f32 %v274, %v277
    %s279 = sld [smem:[#allocation2 + $0x19]]
    %v280 = vstv %s279
    %v281 = vadd.f32 %v278, %v280
    %v282 = vmax.f32 %v281, 0.0
    %s283 = sld [smem:[#allocation2 + $0x21]]
    %v284 = vstv %s283
    %v285 = vmul.f32 %v282, %v284
    %v286 = vadd.f32 %v267, %v285
    %s287 = sld [smem:[#allocation2 + $0x6]]
    %v288 = vstv %s287
    %v289 = vmul.f32 %v145, %v288
    %s290 = sld [smem:[#allocation2 + $0x7]]
    %v291 = vstv %s290
    %v292 = vmul.f32 %v248, %v291
    %v293 = vadd.f32 %v289, %v292
    %s294 = sld [smem:[#allocation2 + $0x8]]
    %v295 = vstv %s294
    %v296 = vmul.f32 %v39, %v295
    %v297 = vadd.f32 %v293, %v296
    %s298 = sld [smem:[#allocation2 + $0x1a]]
    %v299 = vstv %s298
    %v300 = vadd.f32 %v297, %v299
    %v301 = vmax.f32 %v300, 0.0
    %s302 = sld [smem:[#allocation2 + $0x22]]
    %v303 = vstv %s302
    %v304 = vmul.f32 %v301, %v303
    %v305 = vadd.f32 %v286, %v304
    %s306 = sld [smem:[#allocation2 + $0x9]]
    %v307 = vstv %s306
    %v308 = vmul.f32 %v145, %v307
    %s309 = sld [smem:[#allocation2 + $0xa]]
    %v310 = vstv %s309
    %v311 = vmul.f32 %v248, %v310
    %v312 = vadd.f32 %v308, %v311
    %s313 = sld [smem:[#allocation2 + $0xb]]
    %v314 = vstv %s313
    %v315 = vmul.f32 %v39, %v314
    %v316 = vadd.f32 %v312, %v315
    %s317 = sld [smem:[#allocation2 + $0x1b]]
    %v318 = vstv %s317
    %v319 = vadd.f32 %v316, %v318
    %v320 = vmax.f32 %v319, 0.0
    %s321 = sld [smem:[#allocation2 + $0x23]]
    %v322 = vstv %s321
    %v323 = vmul.f32 %v320, %v322
    %v324 = vadd.f32 %v305, %v323
    %s325 = sld [smem:[#allocation2 + $0xc]]
    %v326 = vstv %s325
    %v327 = vmul.f32 %v145, %v326
    %s328 = sld [smem:[#allocation2 + $0xd]]
    %v329 = vstv %s328
    %v330 = vmul.f32 %v248, %v329
    %v331 = vadd.f32 %v327, %v330
    %s332 = sld [smem:[#allocation2 + $0xe]]
    %v333 = vstv %s332
    %v334 = vmul.f32 %v39, %v333
    %v335 = vadd.f32 %v331, %v334
    %s336 = sld [smem:[#allocation2 + $0x1c]]
    %v337 = vstv %s336
    %v338 = vadd.f32 %v335, %v337
    %v339 = vmax.f32 %v338, 0.0
    %s340 = sld [smem:[#allocation2 + $0x24]]
    %v341 = vstv %s340
    %v342 = vmul.f32 %v339, %v341
    %v343 = vadd.f32 %v324, %v342
    %s344 = sld [smem:[#allocation2 + $0xf]]
    %v345 = vstv %s344
    %v346 = vmul.f32 %v145, %v345
    %s347 = sld [smem:[#allocation2 + $0x10]]
    %v348 = vstv %s347
    %v349 = vmul.f32 %v248, %v348
    %v350 = vadd.f32 %v346, %v349
    %s351 = sld [smem:[#allocation2 + $0x11]]
    %v352 = vstv %s351
    %v353 = vmul.f32 %v39, %v352
    %v354 = vadd.f32 %v350, %v353
    %s355 = sld [smem:[#allocation2 + $0x1d]]
    %v356 = vstv %s355
    %v357 = vadd.f32 %v354, %v356
    %v358 = vmax.f32 %v357, 0.0
    %s359 = sld [smem:[#allocation2 + $0x25]]
    %v360 = vstv %s359
    %v361 = vmul.f32 %v358, %v360
    %v362 = vadd.f32 %v343, %v361
    %s363 = sld [smem:[#allocation2 + $0x12]]
    %v364 = vstv %s363
    %v365 = vmul.f32 %v145, %v364
    %s366 = sld [smem:[#allocation2 + $0x13]]
    %v367 = vstv %s366
    %v368 = vmul.f32 %v248, %v367
    %v369 = vadd.f32 %v365, %v368
    %s370 = sld [smem:[#allocation2 + $0x14]]
    %v371 = vstv %s370
    %v372 = vmul.f32 %v39, %v371
    %v373 = vadd.f32 %v369, %v372
    %s374 = sld [smem:[#allocation2 + $0x1e]]
    %v375 = vstv %s374
    %v376 = vadd.f32 %v373, %v375
    %v377 = vmax.f32 %v376, 0.0
    %s378 = sld [smem:[#allocation2 + $0x26]]
    %v379 = vstv %s378
    %v380 = vmul.f32 %v377, %v379
    %v381 = vadd.f32 %v362, %v380
    %s382 = sld [smem:[#allocation2 + $0x15]]
    %v383 = vstv %s382
    %v384 = vmul.f32 %v145, %v383
    %s385 = sld [smem:[#allocation2 + $0x16]]
    %v386 = vstv %s385
    %v387 = vmul.f32 %v248, %v386
    %v388 = vadd.f32 %v384, %v387
    %s389 = sld [smem:[#allocation2 + $0x17]]
    %v390 = vstv %s389
    %v391 = vmul.f32 %v39, %v390
    %v392 = vadd.f32 %v388, %v391
    %s393 = sld [smem:[#allocation2 + $0x1f]]
    %v394 = vstv %s393
    %v395 = vadd.f32 %v392, %v394
    %v396 = vmax.f32 %v395, 0.0
    %s397 = sld [smem:[#allocation2 + $0x27]]
    %v398 = vstv %s397
    %v399 = vmul.f32 %v396, %v398
    %v400 = vadd.f32 %v381, %v399
    %s401 = sld [smem:[#allocation2 + $0x28]]
    %v402 = vstv %s401
    %v403 = vadd.f32 %v400, %v402
    %v404 = vtanh.pop %v403
    %v405 = vadd.f32 %v404, %v41
    %406 = vst [vmem:[#allocation7] sm:$0xff] %v405
    %v407 = vmul.f32 %v41, %v41
    %v408 = vmul.f32 %v407, -0.5
    %v409 = vsub.f32 %v408, 0.9189385
    %s410 = scalar_lea.vmem [#allocation7], 8
    %411 = vst [vmem:[%s410] sm:$0xff] %v409
    // Predicated region
    $region18: #{tpu_custom_call.1} parent=1 // pred_check
      _
    $region19: #{tpu_custom_call.1} parent=1 // pred_check_branch
      %413 = sbr.rel (0) target = $region21
    $region20: #{tpu_custom_call.1} parent=1 // pred_region
      %s415 = ssub.s32 256, 256
      %416 = vsyncadd [#allocation4], %s415
      %s417 = sshll.u32 [#allocation7], 4
      %s418 = int_to_ptr.vmem [resolvable:$true] %s417
      %423 = dma.vmem_to_hbm [thread:$0]  %s418, 256, %s2, [#allocation4], 128, 128, 8
    $region21: #{tpu_custom_call.1} parent=1 // pred_fallthru
      _
    // Predicated region
    $region22: #{tpu_custom_call.1} parent=1 // pred_check
      _
    $region23: #{tpu_custom_call.1} parent=1 // pred_check_branch
      %425 = sbr.rel (0) target = $region25
    $region24: #{tpu_custom_call.1} parent=1 // pred_region
      %426 = dma.done [#allocation4], 256
    $region25: #{tpu_custom_call.1} parent=1 // pred_fallthru
      _
    %427 = vsyncpa [#allocation3], 1
    %428 = vsyncpa [#allocation4], 1
    %429 = vsyncpa [#allocation5], 1

</llo_original>
